<compile_context>
chip_gen: v7x
topology: tpu7x:2x2x1
jax: 0.10.0
libtpu: 0.0.40
codegen_flags: <defaults>
</compile_context>

<pallas_src>
import functools

import jax
import jax.numpy as jnp
from jax import lax
from jax.experimental import pallas as pl
from jax.experimental.pallas import tpu as pltpu

EPS = 1e-5


def _vmem_limit_bytes():
    """Generation-aware scoped-VMEM budget (v5e/v6e: 128 MiB phys, v7x: 64 MiB)."""
    cap = 64 * 1024 * 1024  # safe fallback = smallest (v7x) physical VMEM
    try:
        cap = int(pltpu.get_tpu_info().vmem_capacity_bytes)
    except Exception:
        pass
    # Use ~3/4 of physical, never above 96 MiB, never below 16 MiB.
    return max(16 * 1024 * 1024, min(3 * cap // 4, 96 * 1024 * 1024))


# ---------------------------------------------------------------------------
# Path A: fully fused single kernel (x resident in VMEM).
# ---------------------------------------------------------------------------
def _bn_fused_kernel(x_ref, gamma_ref, beta_ref, o_ref):
    x = x_ref[...].astype(jnp.float32)                        # (N, C, HW)
    m = x.shape[0] * x.shape[2]
    mean = jnp.sum(x, axis=(0, 2), keepdims=True) / m         # (1, C, 1)
    centered = x - mean
    # Numerically stable biased variance: E[(x - mean)^2].
    var = jnp.sum(centered * centered, axis=(0, 2), keepdims=True) / m
    scale = gamma_ref[...] * lax.rsqrt(var + EPS)              # (1, C, 1)
    o_ref[...] = (centered * scale + beta_ref[...]).astype(o_ref.dtype)


# ---------------------------------------------------------------------------
# Path B: streaming two-pass kernels for tensors that don't fit in VMEM.
# ---------------------------------------------------------------------------
def _bn_stats_kernel(x_ref, sum_ref, sumsq_ref):
    """Accumulate lane-dense per-channel sum / sum-of-squares partials."""
    t = pl.program_id(1)

    @pl.when(t == 0)
    def _():
        sum_ref[...] = jnp.zeros_like(sum_ref)
        sumsq_ref[...] = jnp.zeros_like(sumsq_ref)

    x = x_ref[...].astype(jnp.float32)                 # (bn, C, hw_t)
    _, c, hw_t = x.shape
    lw = sum_ref.shape[-1]
    s = jnp.sum(x, axis=0)                             # (C, hw_t)  cross-vreg VPU adds
    sq = jnp.sum(x * x, axis=0)
    if hw_t != lw:                                     # fold lanes in lw-wide chunks (VPU only)
        s = jnp.sum(s.reshape(c, hw_t // lw, lw), axis=1)
        sq = jnp.sum(sq.reshape(c, hw_t // lw, lw), axis=1)
    sum_ref[...] += s[None]                            # (1, C, lw)
    sumsq_ref[...] += sq[None]


def _bn_apply_kernel(sum_ref, sumsq_ref, gamma_ref, beta_ref, x_ref, o_ref, *, m):
    """y = x*scale + shift; scale/shift folded in-kernel from the raw sums."""
    # Tiny per-step fold (a couple of vregs) keeps both grid axes fully
    # "parallel" and removes all host-side glue dispatches between passes.
    total = jnp.sum(jnp.sum(sum_ref[...], axis=0), axis=-1, keepdims=True)      # (C, 1)
    totalsq = jnp.sum(jnp.sum(sumsq_ref[...], axis=0), axis=-1, keepdims=True)  # (C, 1)
    mean = total / m
    var = jnp.maximum(totalsq / m - mean * mean, 0.0)   # guard f32 cancellation
    scale = gamma_ref[...] * lax.rsqrt(var + EPS)       # (C, 1)
    shift = beta_ref[...] - mean * scale                # (C, 1)
    x = x_ref[...].astype(jnp.float32)                  # (bn, C, hw_t)
    o_ref[...] = (x * scale + shift).astype(o_ref.dtype)


def _choose_tiles(n, c, hw, itemsize, block_budget):
    """Pick (bn, hw_tile) so one block stays within block_budget bytes."""
    row_bytes = c * hw * itemsize
    if row_bytes <= block_budget:
        bn = 1
        for cand in range(n, 0, -1):                   # largest divisor of N that fits
            if n % cand == 0 and cand * row_bytes <= block_budget:
                bn = cand
                break
        return bn, hw
    # One batch row is too big: tile the lane (HW) axis in multiples of 128.
    if hw % 128 == 0:
        hw_t = 128
        for cand in range(hw, 127, -128):
            if hw % cand == 0 and c * cand * itemsize <= block_budget:
                hw_t = cand
                break
        return 1, hw_t
    # TODO(synk): mask-based tiling for HW not a multiple of 128; fall back to full rows.
    return 1, hw


@functools.partial(jax.jit, static_argnames=("force_streaming", "block_budget"))
def batchnorm2d(x_nchw, gamma, beta, *, force_streaming=False, block_budget=None):
    """x_nchw: (N, C, H, W); gamma, beta: (C,). Returns normalized (N, C, H, W)."""
    N, C, H, W = x_nchw.shape
    HW = H * W
    M = N * HW

    # Contiguous reshape: zero data movement (no transpose).
    x3 = x_nchw.reshape(N, C, HW)
    vmem_limit = _vmem_limit_bytes()
    x_bytes = x3.size * x3.dtype.itemsize
    # in + out (native) plus ~4 f32-sized working temps must fit in VMEM.
    fused_need = 2 * x_bytes + 4 * x3.size * 4

    # ---------------- Path A: fully fused (single launch). ----------------
    if (not force_streaming) and fused_need <= vmem_limit:
        out3 = pl.pallas_call(
            _bn_fused_kernel,
            out_shape=jax.ShapeDtypeStruct((N, C, HW), x3.dtype),
            compiler_params=pltpu.CompilerParams(vmem_limit_bytes=vmem_limit),
        )(x3,
          gamma.reshape(1, C, 1).astype(jnp.float32),
          beta.reshape(1, C, 1).astype(jnp.float32))
        return out3.reshape(N, C, H, W)

    # ---------------- Path B: streaming two passes. ----------------
    budget = block_budget if block_budget is not None else vmem_limit // 8
    bn, hw_t = _choose_tiles(N, C, HW, x3.dtype.itemsize, budget)
    n_bn = N // bn
    n_hw = HW // hw_t
    n_tiles = n_bn * n_hw
    lw = 128 if hw_t % 128 == 0 else hw_t
    # Split the serial reduction into two partials so v7x megacore can shard it.
    n_part = 2 if (n_tiles % 2 == 0 and n_tiles >= 2) else 1
    tiles_per_part = n_tiles // n_part

    def stats_x_map(p, t):
        g = p * tiles_per_part + t
        return (g // n_hw, 0, g % n_hw)

    # Pass 1: per-channel lane-dense sum / sum-of-squares partials (f32).
    sum_c, sumsq_c = pl.pallas_call(
        _bn_stats_kernel,
        out_shape=(jax.ShapeDtypeStruct((n_part, C, lw), jnp.float32),
                   jax.ShapeDtypeStruct((n_part, C, lw), jnp.float32)),
        grid=(n_part, tiles_per_part),
        in_specs=[pl.BlockSpec((bn, C, hw_t), stats_x_map)],
        out_specs=(pl.BlockSpec((1, C, lw), lambda p, t: (p, 0, 0)),
                   pl.BlockSpec((1, C, lw), lambda p, t: (p, 0, 0))),
        compiler_params=pltpu.CompilerParams(
            dimension_semantics=("parallel", "arbitrary"),
            vmem_limit_bytes=vmem_limit),
    )(x3)

    gamma2 = gamma.reshape(C, 1).astype(jnp.float32)
    beta2 = beta.reshape(C, 1).astype(jnp.float32)

    # Pass 2: normalize + affine, fully parallel over (batch, HW) tiles.
    out3 = pl.pallas_call(
        functools.partial(_bn_apply_kernel, m=float(M)),
        out_shape=jax.ShapeDtypeStruct((N, C, HW), x3.dtype),
        grid=(n_bn, n_hw),
        in_specs=[pl.BlockSpec((n_part, C, lw), lambda i, j: (0, 0, 0)),
                  pl.BlockSpec((n_part, C, lw), lambda i, j: (0, 0, 0)),
                  pl.BlockSpec((C, 1), lambda i, j: (0, 0)),
                  pl.BlockSpec((C, 1), lambda i, j: (0, 0)),
                  pl.BlockSpec((bn, C, hw_t), lambda i, j: (i, 0, j))],
        out_specs=pl.BlockSpec((bn, C, hw_t), lambda i, j: (i, 0, j)),
        compiler_params=pltpu.CompilerParams(
            dimension_semantics=("parallel", "parallel"),
            vmem_limit_bytes=vmem_limit),
    )(sum_c, sumsq_c, gamma2, beta2, x3)

    return out3.reshape(N, C, H, W)


if __name__ == "__main__":
    key = jax.random.PRNGKey(0)
    kx, kg, kb = jax.random.split(key, 3)

    N, C, H, W = 2, 8, 16, 16   # BatchNorm2d(8) => C must be 8
    x = jax.random.normal(kx, (N, C, H, W), dtype=jnp.float32)
    # PyTorch default init is gamma=1, beta=0; perturb to exercise affine path.
    gamma = 1.0 + 0.1 * jax.random.normal(kg, (C,), dtype=jnp.float32)
    beta = 0.1 * jax.random.normal(kb, (C,), dtype=jnp.float32)

    # Pure-JAX reference (training-mode BatchNorm2d).
    mean = jnp.mean(x, axis=(0, 2, 3), keepdims=True)
    var = jnp.mean((x - mean) ** 2, axis=(0, 2, 3), keepdims=True)
    ref = (x - mean) / jnp.sqrt(var + EPS) * gamma.reshape(1, C, 1, 1) \
          + beta.reshape(1, C, 1, 1)

    # Default (fused) path — the one exercised at real test sizes.
    out = jax.block_until_ready(batchnorm2d(x, gamma, beta))
    assert out.shape == (N, C, H, W)
    assert jnp.max(jnp.abs(out - ref)) < 1e-4

    # Also validate the streaming path at the same small shape by forcing a
    # tiny per-block budget (exercises HW tiling, lane-dense accumulation and
    # the 2-partial reduction split).
    out_s = jax.block_until_ready(
        batchnorm2d(x, gamma, beta, force_streaming=True, block_budget=4096))
    assert out_s.shape == (N, C, H, W)
    assert jnp.max(jnp.abs(out_s - ref)) < 1e-4

    print("KERNEL_OK")
</pallas_src>

<mosaic_0001>
module attributes {stable_mosaic.version = 11 : i64} {
  func.func @_bn_fused_kernel(%arg0: memref<2x8x256xf32, #tpu.memory_space<vmem>>, %arg1: memref<1x8x1xf32, #tpu.memory_space<vmem>>, %arg2: memref<1x8x1xf32, #tpu.memory_space<vmem>>, %arg3: memref<2x8x256xf32, #tpu.memory_space<vmem>>) attributes {dimension_semantics = [], scalar_prefetch = 0 : i64, scratch_operands = 0 : i64, tpu.core_type = #tpu.core_type<tc>} {
    %c0 = arith.constant 0 : index
    %c0_0 = arith.constant 0 : index
    %c0_1 = arith.constant 0 : index
    %0 = vector.load %arg0[%c0, %c0_0, %c0_1] : memref<2x8x256xf32, #tpu.memory_space<vmem>>, vector<2x8x256xf32>
    %cst = arith.constant dense<0.000000e+00> : vector<8xf32>
    %1 = vector.multi_reduction <add>, %0, %cst [0, 2] : vector<2x8x256xf32> to vector<8xf32>
    %2 = vector.shape_cast %1 : vector<8xf32> to vector<1x8x1xf32>
    %cst_2 = arith.constant 5.120000e+02 : f32
    %3 = vector.broadcast %cst_2 : f32 to vector<1x8x1xf32>
    %4 = arith.divf %2, %3 : vector<1x8x1xf32>
    %5 = vector.broadcast %4 : vector<1x8x1xf32> to vector<2x8x256xf32>
    %6 = arith.subf %0, %5 : vector<2x8x256xf32>
    %7 = arith.mulf %6, %6 : vector<2x8x256xf32>
    %cst_3 = arith.constant dense<0.000000e+00> : vector<8xf32>
    %8 = vector.multi_reduction <add>, %7, %cst_3 [0, 2] : vector<2x8x256xf32> to vector<8xf32>
    %9 = vector.shape_cast %8 : vector<8xf32> to vector<1x8x1xf32>
    %cst_4 = arith.constant 5.120000e+02 : f32
    %10 = vector.broadcast %cst_4 : f32 to vector<1x8x1xf32>
    %11 = arith.divf %9, %10 : vector<1x8x1xf32>
    %c0_5 = arith.constant 0 : index
    %c0_6 = arith.constant 0 : index
    %c0_7 = arith.constant 0 : index
    %12 = vector.load %arg1[%c0_5, %c0_6, %c0_7] : memref<1x8x1xf32, #tpu.memory_space<vmem>>, vector<1x8x1xf32>
    %cst_8 = arith.constant 9.99999974E-6 : f32
    %13 = vector.broadcast %cst_8 : f32 to vector<1x8x1xf32>
    %14 = arith.addf %11, %13 : vector<1x8x1xf32>
    %15 = math.rsqrt %14 : vector<1x8x1xf32>
    %16 = arith.mulf %12, %15 : vector<1x8x1xf32>
    %17 = vector.broadcast %16 : vector<1x8x1xf32> to vector<2x8x256xf32>
    %18 = arith.mulf %6, %17 : vector<2x8x256xf32>
    %c0_9 = arith.constant 0 : index
    %c0_10 = arith.constant 0 : index
    %c0_11 = arith.constant 0 : index
    %19 = vector.load %arg2[%c0_9, %c0_10, %c0_11] : memref<1x8x1xf32, #tpu.memory_space<vmem>>, vector<1x8x1xf32>
    %20 = vector.broadcast %19 : vector<1x8x1xf32> to vector<2x8x256xf32>
    %21 = arith.addf %18, %20 : vector<2x8x256xf32>
    %c0_12 = arith.constant 0 : index
    %c0_13 = arith.constant 0 : index
    %c0_14 = arith.constant 0 : index
    %22 = vector.load %arg3[%c0_12, %c0_13, %c0_14] : memref<2x8x256xf32, #tpu.memory_space<vmem>>, vector<2x8x256xf32>
    tpu.vector_store %arg3[%c0_12, %c0_13, %c0_14], %21 {strides = array<i32>} : memref<2x8x256xf32, #tpu.memory_space<vmem>>, vector<2x8x256xf32>,
    return
  }
}

</mosaic_0001>

<llo_original>
// kernel: batchnorm2d.1
$region0: #{batchnorm2d.1}
  #allocation0 [shape = 'u32[]', space=smem, size = 0x4, offset = 0x4, fixed_abs, tag = 'smem constant byte address 0x4 - core index']
  #allocation1 [shape = 'u32[144,128]{1,0:T(1,128)}', space=vmem, size = 0x12000, scoped, tag = 'internal scratch']
  %s0 = inlined_call_operand.vmem [shape: f32[2,8,256], index: 0, kind: input, shape index: {}]
  %s1 = inlined_call_operand.vmem [shape: f32[1,8,1], index: 1, kind: input, shape index: {}]
  %s2 = inlined_call_operand.vmem [shape: f32[1,8,1], index: 2, kind: input, shape index: {}]
  %s3 = inlined_call_operand.vmem [shape: f32[2,8,256], index: 3, kind: output, shape index: {}]
  %s4 = sld [smem:[#allocation0]]
  $region22: #{batchnorm2d.1} parent=0
    _
  %s6 = ssub.s32 1, %s4
  %s7 = scalar_select 0, %s6, %s4
  // Predicated region
  $region2: #{batchnorm2d.1} parent=0 // pred_check
    _
  $region3: #{batchnorm2d.1} parent=0 // pred_check_branch
    %9 = sbr.rel (0) target = $region5
  $region4: #{batchnorm2d.1} parent=0 // pred_region
    _
  $region5: #{batchnorm2d.1} parent=0 // pred_fallthru
    _
  // Predicated region
  $region6: #{batchnorm2d.1} parent=0 // pred_check
    _
  $region7: #{batchnorm2d.1} parent=0 // pred_check_branch
    %11 = sbr.rel (0) target = $region9
  $region8: #{batchnorm2d.1} parent=0 // pred_region
    _
  $region9: #{batchnorm2d.1} parent=0 // pred_fallthru
    _
  // Predicated region
  $region10: #{batchnorm2d.1} parent=0 // pred_check
    _
  $region11: #{batchnorm2d.1} parent=0 // pred_check_branch
    %13 = sbr.rel (0) target = $region13
  $region12: #{batchnorm2d.1} parent=0 // pred_region
    _
  $region13: #{batchnorm2d.1} parent=0 // pred_fallthru
    _
  %v14 = vld [vmem:[%s0] sm:$0xff]
  %v15 = vld [vmem:[%s0 + $0x8] sm:$0xff]
  %v16 = vld [vmem:[%s0 + $0x10] sm:$0xff]
  %v17 = vld [vmem:[%s0 + $0x18] sm:$0xff]
  %v18 = vadd.f32 %v14, %v15
  %v19 = vadd.f32 %v18, %v16
  %v20 = vadd.f32 %v19, %v17
  %21 = vadd.xlane.f32.xlu0 %v20
  %v22 = vpop.xlane.xlu0 %21
  %v23 = vrcp.pop 512.0
  %v24 = vmul.f32 %v22, %v23
  %v25 = vsub.f32 %v14, %v24
  %v26 = vsub.f32 %v15, %v24
  %v27 = vsub.f32 %v16, %v24
  %v28 = vsub.f32 %v17, %v24
  %v29 = vmul.f32 %v25, %v25
  %v30 = vmul.f32 %v26, %v26
  %v31 = vmul.f32 %v27, %v27
  %v32 = vmul.f32 %v28, %v28
  %v33 = vadd.f32 %v29, %v30
  %v34 = vadd.f32 %v33, %v31
  %v35 = vadd.f32 %v34, %v32
  %36 = vadd.xlane.f32.xlu0 %v35
  %v37 = vpop.xlane.xlu0 %36
  %v38 = vmul.f32 %v37, %v23
  %v39 = vld [vmem:[%s1] sm:$0xff]
  %v40 = vadd.f32 %v38, 1e-05
  %v41 = vrsqrt.pop %v40
  %v42 = vmul.f32 %v39, %v41
  %44 = vset.pattern.permute.xlu0 0
  %45 = vperm.xlu0 %44, %v42
  %v46 = vpop.permute.xlu0 %45
  %v48 = vmul.f32 %v25, %v46
  %v49 = vmul.f32 %v26, %v46
  %v50 = vmul.f32 %v27, %v46
  %v51 = vmul.f32 %v28, %v46
  %v52 = vld [vmem:[%s2] sm:$0xff]
  %54 = vset.pattern.permute.xlu0 0
  %55 = vperm.xlu0 %54, %v52
  %v56 = vpop.permute.xlu0 %55
  %v58 = vadd.f32 %v48, %v56
  %v59 = vadd.f32 %v49, %v56
  %v60 = vadd.f32 %v50, %v56
  %v61 = vadd.f32 %v51, %v56
  %62 = vst [vmem:[%s3] sm:$0xff] %v58
  %63 = vst [vmem:[%s3 + $0x8] sm:$0xff] %v59
  %64 = vst [vmem:[%s3 + $0x10] sm:$0xff] %v60
  %65 = vst [vmem:[%s3 + $0x18] sm:$0xff] %v61
  // Predicated region
  $region14: #{batchnorm2d.1} parent=0 // pred_check
    _
  $region15: #{batchnorm2d.1} parent=0 // pred_check_branch
    %67 = sbr.rel (0) target = $region17
  $region16: #{batchnorm2d.1} parent=0 // pred_region
    _
  $region17: #{batchnorm2d.1} parent=0 // pred_fallthru
    _
  // Predicated region
  $region18: #{batchnorm2d.1} parent=0 // pred_check
    _
  $region19: #{batchnorm2d.1} parent=0 // pred_check_branch
    %69 = sbr.rel (0) target = $region21
  $region20: #{batchnorm2d.1} parent=0 // pred_region
    _
  $region21: #{batchnorm2d.1} parent=0 // pred_fallthru
    _

</llo_original>
